<compile_context>
chip_gen: v7x
topology: tpu7x:2x2x1
jax: 0.10.0
libtpu: 0.0.40
codegen_flags: <defaults>
</compile_context>

<pallas_src>
import jax
import jax.numpy as jnp
from jax.experimental import pallas as pl
from jax.experimental.pallas import tpu as pltpu

_NEG_BIG = -1e30  # bias value for padded (fake) classes -> exp() underflows to 0


def _mlp_logsoftmax_kernel(x_ref, w1_ref, b1_ref, w2_ref, b2_ref, o_ref):
    # Hidden layer: MXU matmul with f32 accumulation; bias add + ReLU in f32 (VPU).
    h = jnp.dot(x_ref[...], w1_ref[...], preferred_element_type=jnp.float32)
    h = jnp.maximum(h + b1_ref[...], 0.0)

    # Output layer. h is cast to the weight dtype (bf16 path keeps MXU inputs
    # narrow while accumulating in f32). Padded class columns of W2 are zero and
    # their bias is -1e30, so they never win the max and contribute 0 to the sum.
    logits = jnp.dot(h.astype(w2_ref.dtype), w2_ref[...],
                     preferred_element_type=jnp.float32) + b2_ref[...]

    # Numerically-stable log_softmax over the lane-dense (padded) class axis.
    m = jnp.max(logits, axis=-1, keepdims=True)          # XLU reduce
    shifted = logits - m
    lse = jnp.log(jnp.sum(jnp.exp(shifted), axis=-1, keepdims=True))  # EUP + XLU
    o_ref[...] = (shifted - lse).astype(o_ref.dtype)


def two_layer_classifier(x, w1, b1, w2, b2, *, block_b=128, compute_dtype=None):
    """Forward pass of Linear -> ReLU -> Linear -> log_softmax.

    x: (B, D_in); w1: (D_in, H); b1: (H,); w2: (H, C); b2: (C,)
    Returns (B, C) float32 log-probabilities.
    compute_dtype: optionally cast x/w1/w2 (e.g. jnp.bfloat16) for the MXU inputs;
                   accumulation, biases, ReLU and log_softmax stay in float32.
    """
    B, D_in = x.shape
    H = w1.shape[1]
    C = w2.shape[1]

    if compute_dtype is not None:
        x = x.astype(compute_dtype)
        w1 = w1.astype(compute_dtype)
        w2 = w2.astype(compute_dtype)

    # Lane-dense output: pad the class axis up to a multiple of 128 so stores are
    # unmasked full-width vst instead of masked partial stores. The padded classes
    # are neutralized with a huge negative bias (see kernel).
    c_pad = max(128, ((C + 127) // 128) * 128)
    w2_p = jnp.zeros((H, c_pad), w2.dtype).at[:, :C].set(w2)
    b2_p = jnp.full((1, c_pad), _NEG_BIG, jnp.float32).at[0, :C].set(
        b2.astype(jnp.float32))
    b1_2d = b1.reshape(1, H).astype(jnp.float32)

    # Batch tile: sublane-aligned (multiple of 8) and as large as requested.
    # Weights/biases have a constant index_map -> resident across the grid; only
    # x/out tiles stream, so the pipeline prefetches batch tile i+1 while
    # computing tile i.
    if B % 8 == 0:
        tb = max(8, (min(block_b, B) // 8) * 8)
    else:
        tb = B  # block == full dim satisfies the (8,128) tiling rule
    grid = (pl.cdiv(B, tb),)

    out_padded = pl.pallas_call(
        _mlp_logsoftmax_kernel,
        out_shape=jax.ShapeDtypeStruct((B, c_pad), jnp.float32),
        grid=grid,
        in_specs=[
            pl.BlockSpec((tb, D_in), lambda i: (i, 0)),    # streamed batch tile
            pl.BlockSpec((D_in, H), lambda i: (0, 0)),     # resident weights
            pl.BlockSpec((1, H), lambda i: (0, 0)),        # resident bias
            pl.BlockSpec((H, c_pad), lambda i: (0, 0)),    # resident weights
            pl.BlockSpec((1, c_pad), lambda i: (0, 0)),    # resident bias
        ],
        out_specs=pl.BlockSpec((tb, c_pad), lambda i: (i, 0)),
        compiler_params=pltpu.CompilerParams(
            # Batch tiles are independent -> shard across TensorCores (2x on v7x).
            dimension_semantics=("parallel",),
        ),
    )(x, w1, b1_2d, w2_p, b2_p)

    return out_padded[:, :C]


def _init_params(key, d_in, hidden, n_classes):
    # Deterministic init mimicking torch.nn.Linear's U(-1/sqrt(fan_in), 1/sqrt(fan_in)).
    k1, k2, k3, k4 = jax.random.split(key, 4)
    lim1 = 1.0 / jnp.sqrt(jnp.float32(d_in))
    lim2 = 1.0 / jnp.sqrt(jnp.float32(hidden))
    w1 = jax.random.uniform(k1, (d_in, hidden), jnp.float32, -lim1, lim1)
    b1 = jax.random.uniform(k2, (hidden,), jnp.float32, -lim1, lim1)
    w2 = jax.random.uniform(k3, (hidden, n_classes), jnp.float32, -lim2, lim2)
    b2 = jax.random.uniform(k4, (n_classes,), jnp.float32, -lim2, lim2)
    return w1, b1, w2, b2


if __name__ == "__main__":
    key = jax.random.PRNGKey(0)
    k_x, k_p = jax.random.split(key)

    # Small shapes consistent with the module; batch=64 with block_b=32 exercises
    # a real batch-tiled grid of 2 steps.
    batch, d_in, hidden, n_classes = 64, 16, 32, 8
    x = jax.random.normal(k_x, (batch, d_in), jnp.float32)
    w1, b1, w2, b2 = _init_params(k_p, d_in, hidden, n_classes)

    # --- f32 path: exact check against a pure-JAX reference ---
    out = two_layer_classifier(x, w1, b1, w2, b2, block_b=32)
    out = jax.block_until_ready(out)

    h_ref = jnp.maximum(x @ w1 + b1, 0.0)
    logits_ref = h_ref @ w2 + b2
    ref = jax.nn.log_softmax(logits_ref, axis=-1)
    assert out.shape == (batch, n_classes)
    assert jnp.allclose(out, ref, atol=1e-5, rtol=1e-5)

    # --- bf16-MXU path (f32 accumulation): check against a bf16-matched reference ---
    out_bf16 = two_layer_classifier(x, w1, b1, w2, b2, block_b=32,
                                    compute_dtype=jnp.bfloat16)
    out_bf16 = jax.block_until_ready(out_bf16)

    xb = x.astype(jnp.bfloat16)
    w1b = w1.astype(jnp.bfloat16)
    w2b = w2.astype(jnp.bfloat16)
    hb = jnp.maximum(jnp.dot(xb, w1b, preferred_element_type=jnp.float32) + b1, 0.0)
    lb = jnp.dot(hb.astype(jnp.bfloat16), w2b,
                 preferred_element_type=jnp.float32) + b2
    ref_b = jax.nn.log_softmax(lb, axis=-1)
    assert out_bf16.shape == (batch, n_classes)
    assert jnp.allclose(out_bf16, ref_b, atol=5e-3, rtol=5e-3)

    print("KERNEL_OK")
</pallas_src>

<mosaic_0001>
module attributes {stable_mosaic.version = 11 : i64} {
  func.func @_mlp_logsoftmax_kernel(%arg0: i32, %arg1: memref<32x16xf32, #tpu.memory_space<vmem>>, %arg2: memref<16x32xf32, #tpu.memory_space<vmem>>, %arg3: memref<1x32xf32, #tpu.memory_space<vmem>>, %arg4: memref<32x128xf32, #tpu.memory_space<vmem>>, %arg5: memref<1x128xf32, #tpu.memory_space<vmem>>, %arg6: memref<32x128xf32, #tpu.memory_space<vmem>>) attributes {dimension_semantics = [#tpu.dimension_semantics<parallel>], iteration_bounds = array<i64: 2>, scalar_prefetch = 0 : i64, scratch_operands = 0 : i64, tpu.core_type = #tpu.core_type<tc>, window_params = [{transform_indices = @transform_0, window_bounds = array<i64: 32, 16>}, {pipeline_mode = #tpu.pipeline_mode<synchronous>, transform_indices = @transform_1, window_bounds = array<i64: 16, 32>}, {pipeline_mode = #tpu.pipeline_mode<synchronous>, transform_indices = @transform_2, window_bounds = array<i64: 1, 32>}, {pipeline_mode = #tpu.pipeline_mode<synchronous>, transform_indices = @transform_3, window_bounds = array<i64: 32, 128>}, {pipeline_mode = #tpu.pipeline_mode<synchronous>, transform_indices = @transform_4, window_bounds = array<i64: 1, 128>}, {transform_indices = @transform_5, window_bounds = array<i64: 32, 128>}]} {
    %c0 = arith.constant 0 : index
    %c0_0 = arith.constant 0 : index
    %0 = vector.load %arg1[%c0, %c0_0] : memref<32x16xf32, #tpu.memory_space<vmem>>, vector<32x16xf32>
    %c0_1 = arith.constant 0 : index
    %c0_2 = arith.constant 0 : index
    %1 = vector.load %arg2[%c0_1, %c0_2] : memref<16x32xf32, #tpu.memory_space<vmem>>, vector<16x32xf32>
    %cst = arith.constant dense<0.000000e+00> : vector<32x32xf32>
    %2 = tpu.matmul %0, %1, %cst {dimension_numbers = #tpu.dot_dimension_numbers<[1], [0], [0], [1], [0, 0, 1, 1], [], []>} : vector<32x16xf32>, vector<16x32xf32>, vector<32x32xf32> -> vector<32x32xf32>
    %c0_3 = arith.constant 0 : index
    %c0_4 = arith.constant 0 : index
    %3 = vector.load %arg3[%c0_3, %c0_4] : memref<1x32xf32, #tpu.memory_space<vmem>>, vector<1x32xf32>
    %4 = vector.broadcast %3 : vector<1x32xf32> to vector<32x32xf32>
    %5 = arith.addf %2, %4 : vector<32x32xf32>
    %cst_5 = arith.constant 0.000000e+00 : f32
    %6 = vector.broadcast %cst_5 : f32 to vector<32x32xf32>
    %7 = arith.maximumf %5, %6 : vector<32x32xf32>
    %c0_6 = arith.constant 0 : index
    %c0_7 = arith.constant 0 : index
    %8 = vector.load %arg4[%c0_6, %c0_7] : memref<32x128xf32, #tpu.memory_space<vmem>>, vector<32x128xf32>
    %cst_8 = arith.constant dense<0.000000e+00> : vector<32x128xf32>
    %9 = tpu.matmul %7, %8, %cst_8 {dimension_numbers = #tpu.dot_dimension_numbers<[1], [0], [0], [1], [0, 0, 1, 1], [], []>} : vector<32x32xf32>, vector<32x128xf32>, vector<32x128xf32> -> vector<32x128xf32>
    %c0_9 = arith.constant 0 : index
    %c0_10 = arith.constant 0 : index
    %10 = vector.load %arg5[%c0_9, %c0_10] : memref<1x128xf32, #tpu.memory_space<vmem>>, vector<1x128xf32>
    %11 = vector.broadcast %10 : vector<1x128xf32> to vector<32x128xf32>
    %12 = arith.addf %9, %11 : vector<32x128xf32>
    %cst_11 = arith.constant dense<0xFF800000> : vector<32xf32>
    %13 = vector.multi_reduction <maximumf>, %12, %cst_11 [1] : vector<32x128xf32> to vector<32xf32>
    %14 = vector.shape_cast %13 : vector<32xf32> to vector<32x1xf32>
    %15 = vector.broadcast %14 : vector<32x1xf32> to vector<32x128xf32>
    %16 = arith.subf %12, %15 : vector<32x128xf32>
    %17 = math.exp %16 : vector<32x128xf32>
    %cst_12 = arith.constant dense<0.000000e+00> : vector<32xf32>
    %18 = vector.multi_reduction <add>, %17, %cst_12 [1] : vector<32x128xf32> to vector<32xf32>
    %19 = vector.shape_cast %18 : vector<32xf32> to vector<32x1xf32>
    %20 = math.log %19 : vector<32x1xf32>
    %21 = vector.broadcast %20 : vector<32x1xf32> to vector<32x128xf32>
    %22 = arith.subf %16, %21 : vector<32x128xf32>
    %c0_13 = arith.constant 0 : index
    %c0_14 = arith.constant 0 : index
    %23 = vector.load %arg6[%c0_13, %c0_14] : memref<32x128xf32, #tpu.memory_space<vmem>>, vector<32x128xf32>
    tpu.vector_store %arg6[%c0_13, %c0_14], %22 {strides = array<i32>} : memref<32x128xf32, #tpu.memory_space<vmem>>, vector<32x128xf32>,
    return
  }
  func.func @transform_0(%arg0: i32) -> (i32, i32) {
    %c0_i32 = arith.constant 0 : i32
    %c0_i32_0 = arith.constant 0 : i32
    return %arg0, %c0_i32 : i32, i32
  }
  func.func @transform_1(%arg0: i32) -> (i32, i32) {
    %c0_i32 = arith.constant 0 : i32
    %c0_i32_0 = arith.constant 0 : i32
    %c0_i32_1 = arith.constant 0 : i32
    return %c0_i32, %c0_i32_0 : i32, i32
  }
  func.func @transform_2(%arg0: i32) -> (i32, i32) {
    %c0_i32 = arith.constant 0 : i32
    %c0_i32_0 = arith.constant 0 : i32
    %c0_i32_1 = arith.constant 0 : i32
    return %c0_i32, %c0_i32_0 : i32, i32
  }
  func.func @transform_3(%arg0: i32) -> (i32, i32) {
    %c0_i32 = arith.constant 0 : i32
    %c0_i32_0 = arith.constant 0 : i32
    %c0_i32_1 = arith.constant 0 : i32
    return %c0_i32, %c0_i32_0 : i32, i32
  }
  func.func @transform_4(%arg0: i32) -> (i32, i32) {
    %c0_i32 = arith.constant 0 : i32
    %c0_i32_0 = arith.constant 0 : i32
    %c0_i32_1 = arith.constant 0 : i32
    return %c0_i32, %c0_i32_0 : i32, i32
  }
  func.func @transform_5(%arg0: i32) -> (i32, i32) {
    %c0_i32 = arith.constant 0 : i32
    %c0_i32_0 = arith.constant 0 : i32
    return %arg0, %c0_i32 : i32, i32
  }
}

</mosaic_0001>

<llo_original>
// kernel: tpu_custom_call.1
$region0: #{tpu_custom_call.1}
  #allocation0 [shape = 'u32[]', space=smem, size = 0x4, offset = 0x4, fixed_abs, tag = 'smem constant byte address 0x4 - core index']
  #allocation1 [shape = 'u32[144,128]{1,0:T(1,128)}', space=vmem, size = 0x12000, scoped, tag = 'internal scratch']
  %s0 = inlined_call_operand.vmem [shape: f32[64,16], index: 0, kind: input, shape index: {}]
  %s1 = inlined_call_operand.vmem [shape: f32[16,32], index: 1, kind: input, shape index: {}]
  %s2 = inlined_call_operand.vmem [shape: f32[1,32], index: 2, kind: input, shape index: {}]
  %s3 = inlined_call_operand.vmem [shape: f32[32,128], index: 3, kind: input, shape index: {}]
  %s4 = inlined_call_operand.vmem [shape: f32[1,128], index: 4, kind: input, shape index: {}]
  %s5 = inlined_call_operand.hbm [shape: f32[64,128], index: 5, kind: output, shape index: {}]
  %s6 = sld [smem:[#allocation0]]
  $region53: #{tpu_custom_call.1} parent=0
    _
  %s8 = ssub.s32 1, %s6
  %s9 = scalar_select 0, %s8, %s6
  $region1: #{tpu_custom_call.1} parent=0
    #allocation2 [shape = 'u8[32768]{0}', space=vmem, size = 0x8000, scoped, tag = 'output window, operand 0']
    #allocation3 [shape = 's32[2]{0}', space=sflag, size = 0x8, scoped, tag = 'scoped memory for tpu_custom_call.1']
    %10 = vsyncpa [#allocation3], 0
    %s11 = scalar_lea.sflag [#allocation3], 1
    %12 = vsyncpa %s11, 0
    loop: start=0, step=1, limit=4
    $region2: #{tpu_custom_call.1} parent=1 // loop_pre_header
      _
    $region3: #{tpu_custom_call.1} parent=1 // loop_header
      %s14 = sphi 0, %s18
      %p15 = scmp.ge.s32.totalorder %s14, 4
      %s24 = sphi 0, %s26
      %s27 = sphi 0, %s24
      %s28 = sphi 0, %s27
      %s44 = sphi 0, %s28
      %s48 = sphi 0, %s48
      %s50 = sphi 0, %s48
      %s51 = sphi 0, %s50
      %s65 = sphi 0, %s51
      %s69 = sphi 0, %s69
      %s71 = sphi 0, %s69
      %s72 = sphi 0, %s71
      %s86 = sphi 0, %s72
      %s90 = sphi 0, %s90
      %s92 = sphi 0, %s90
      %s93 = sphi 0, %s92
      %s107 = sphi 0, %s93
      %s111 = sphi 0, %s111
      %s113 = sphi 0, %s111
      %s114 = sphi 0, %s113
      %s128 = sphi 0, %s114
      %s134 = sphi 0, %s136
      %s137 = sphi 0, %s134
      %s138 = sphi 0, %s137
      %s154 = sphi 0, %s138
    $region4: #{tpu_custom_call.1} parent=1 // loop_header_branch
      %17 = sbr.rel (%p15) target = $region8
    $region5: #{tpu_custom_call.1} parent=1 // loop_body
      %s19 = ssub.s32 %s14, 1
      %s20 = ssub.s32 %s14, 2
      %s21 = sadd.s32 %s14, 1
      %s22 = ssub.s32 %s14, %s21
      %p23 = scmp.eq.s32.totalorder %s22, 0
      %s25 = sadd.s32 %s24, 1
      %s26 = scalar_select %p23, %s24, %s25
      %p29 = pneg %p23
      %p30 = scmp.eq.s32.totalorder %s14, 1
      %p31 = por %p29, %p30
      %p32 = scmp.ne.s32.totalorder %s24, %s27
      %p33 = scmp.eq.s32.totalorder %s14, 0
      %p34 = por %p32, %p33
      %p35 = scmp.ne.s32.totalorder %s24, %s27
      %p36 = scmp.eq.s32.totalorder %s19, 1
      %p37 = por %p35, %p36
      %p38 = scmp.ne.s32.totalorder %s27, %s28
      %p39 = scmp.eq.s32.totalorder %s19, 0
      %p40 = por %p38, %p39
      %p41 = scmp.ne.s32.totalorder %s27, %s28
      %p42 = scmp.eq.s32.totalorder %s20, 1
      %p43 = por %p41, %p42
      %p45 = scmp.ne.s32.totalorder %s28, %s44
      %p46 = scmp.eq.s32.totalorder %s20, 0
      %p47 = por %p45, %p46
      %s49 = sadd.s32 %s48, 1
      %p52 = scmp.eq.s32.totalorder %s14, 1
      %p53 = scmp.ne.s32.totalorder %s48, %s50
      %p54 = scmp.eq.s32.totalorder %s14, 0
      %p55 = por %p53, %p54
      %p56 = scmp.ne.s32.totalorder %s48, %s50
      %p57 = scmp.eq.s32.totalorder %s19, 1
      %p58 = por %p56, %p57
      %p59 = scmp.ne.s32.totalorder %s50, %s51
      %p60 = scmp.eq.s32.totalorder %s19, 0
      %p61 = por %p59, %p60
      %p62 = scmp.ne.s32.totalorder %s50, %s51
      %p63 = scmp.eq.s32.totalorder %s20, 1
      %p64 = por %p62, %p63
      %p66 = scmp.ne.s32.totalorder %s51, %s65
      %p67 = scmp.eq.s32.totalorder %s20, 0
      %p68 = por %p66, %p67
      %s70 = sadd.s32 %s69, 1
      %p73 = scmp.eq.s32.totalorder %s14, 1
      %p74 = scmp.ne.s32.totalorder %s69, %s71
      %p75 = scmp.eq.s32.totalorder %s14, 0
      %p76 = por %p74, %p75
      %p77 = scmp.ne.s32.totalorder %s69, %s71
      %p78 = scmp.eq.s32.totalorder %s19, 1
      %p79 = por %p77, %p78
      %p80 = scmp.ne.s32.totalorder %s71, %s72
      %p81 = scmp.eq.s32.totalorder %s19, 0
      %p82 = por %p80, %p81
      %p83 = scmp.ne.s32.totalorder %s71, %s72
      %p84 = scmp.eq.s32.totalorder %s20, 1
      %p85 = por %p83, %p84
      %p87 = scmp.ne.s32.totalorder %s72, %s86
      %p88 = scmp.eq.s32.totalorder %s20, 0
      %p89 = por %p87, %p88
      %s91 = sadd.s32 %s90, 1
      %p94 = scmp.eq.s32.totalorder %s14, 1
      %p95 = scmp.ne.s32.totalorder %s90, %s92
      %p96 = scmp.eq.s32.totalorder %s14, 0
      %p97 = por %p95, %p96
      %p98 = scmp.ne.s32.totalorder %s90, %s92
      %p99 = scmp.eq.s32.totalorder %s19, 1
      %p100 = por %p98, %p99
      %p101 = scmp.ne.s32.totalorder %s92, %s93
      %p102 = scmp.eq.s32.totalorder %s19, 0
      %p103 = por %p101, %p102
      %p104 = scmp.ne.s32.totalorder %s92, %s93
      %p105 = scmp.eq.s32.totalorder %s20, 1
      %p106 = por %p104, %p105
      %p108 = scmp.ne.s32.totalorder %s93, %s107
      %p109 = scmp.eq.s32.totalorder %s20, 0
      %p110 = por %p108, %p109
      %s112 = sadd.s32 %s111, 1
      %p115 = scmp.eq.s32.totalorder %s14, 1
      %p116 = scmp.ne.s32.totalorder %s111, %s113
      %p117 = scmp.eq.s32.totalorder %s14, 0
      %p118 = por %p116, %p117
      %p119 = scmp.ne.s32.totalorder %s111, %s113
      %p120 = scmp.eq.s32.totalorder %s19, 1
      %p121 = por %p119, %p120
      %p122 = scmp.ne.s32.totalorder %s113, %s114
      %p123 = scmp.eq.s32.totalorder %s19, 0
      %p124 = por %p122, %p123
      %p125 = scmp.ne.s32.totalorder %s113, %s114
      %p126 = scmp.eq.s32.totalorder %s20, 1
      %p127 = por %p125, %p126
      %p129 = scmp.ne.s32.totalorder %s114, %s128
      %p130 = scmp.eq.s32.totalorder %s20, 0
      %p131 = por %p129, %p130
      %s132 = ssub.s32 %s14, %s21
      %p133 = scmp.eq.s32.totalorder %s132, 0
      %s135 = sadd.s32 %s134, 1
      %s136 = scalar_select %p133, %s134, %s135
      %p139 = pneg %p133
      %p140 = scmp.eq.s32.totalorder %s14, 1
      %p141 = por %p139, %p140
      %p142 = scmp.ne.s32.totalorder %s134, %s137
      %p143 = scmp.eq.s32.totalorder %s14, 0
      %p144 = por %p142, %p143
      %p145 = scmp.ne.s32.totalorder %s134, %s137
      %p146 = scmp.eq.s32.totalorder %s19, 1
      %p147 = por %p145, %p146
      %p148 = scmp.ne.s32.totalorder %s137, %s138
      %p149 = scmp.eq.s32.totalorder %s19, 0
      %p150 = por %p148, %p149
      %p151 = scmp.ne.s32.totalorder %s137, %s138
      %p152 = scmp.eq.s32.totalorder %s20, 1
      %p153 = por %p151, %p152
      %p155 = scmp.ne.s32.totalorder %s138, %s154
      %p156 = scmp.eq.s32.totalorder %s20, 0
      %p157 = por %p155, %p156
      %p158 = scmp.le.s32.totalorder 1, %s14
      %p159 = scmp.lt.s32.totalorder %s14, 3
      %p160 = pnand %p158, %p159
      %p161 = pneg %p160
      // Predicated region
      $region9: #{tpu_custom_call.1} parent=5 // pred_check
        _
      $region10: #{tpu_custom_call.1} parent=5 // pred_check_branch
        %163 = sbr.rel (%p160) target = $region12
      $region11: #{tpu_custom_call.1} parent=5 // pred_region
        %s164 = ssub.s32 %s14, 1
        // Predicated region
        $region13: #{tpu_custom_call.1} parent=11 // pred_check
          %p165 = pneg %p61
        $region14: #{tpu_custom_call.1} parent=11 // pred_check_branch
          %167 = sbr.rel (%p165) target = $region16
        $region15: #{tpu_custom_call.1} parent=11 // pred_region
          _
        $region16: #{tpu_custom_call.1} parent=11 // pred_fallthru
          _
        // Predicated region
        $region17: #{tpu_custom_call.1} parent=11 // pred_check
          %p168 = pneg %p82
        $region18: #{tpu_custom_call.1} parent=11 // pred_check_branch
          %170 = sbr.rel (%p168) target = $region20
        $region19: #{tpu_custom_call.1} parent=11 // pred_region
          _
        $region20: #{tpu_custom_call.1} parent=11 // pred_fallthru
          _
        // Predicated region
        $region21: #{tpu_custom_call.1} parent=11 // pred_check
          %p171 = pneg %p103
        $region22: #{tpu_custom_call.1} parent=11 // pred_check_branch
          %173 = sbr.rel (%p171) target = $region24
        $region23: #{tpu_custom_call.1} parent=11 // pred_region
          _
        $region24: #{tpu_custom_call.1} parent=11 // pred_fallthru
          _
        // Predicated region
        $region25: #{tpu_custom_call.1} parent=11 // pred_check
          %p174 = pneg %p124
        $region26: #{tpu_custom_call.1} parent=11 // pred_check_branch
          %176 = sbr.rel (%p174) target = $region28
        $region27: #{tpu_custom_call.1} parent=11 // pred_region
          _
        $region28: #{tpu_custom_call.1} parent=11 // pred_fallthru
          _
      $region12: #{tpu_custom_call.1} parent=5 // pred_fallthru
        _
      %p177 = scmp.lt.s32.totalorder %s14, 2
      // Predicated region
      $region29: #{tpu_custom_call.1} parent=5 // pred_check
        %p178 = pneg %p177
      $region30: #{tpu_custom_call.1} parent=5 // pred_check_branch
        %180 = sbr.rel (%p178) target = $region32
      $region31: #{tpu_custom_call.1} parent=5 // pred_region
        // Predicated region
        $region33: #{tpu_custom_call.1} parent=31 // pred_check
          %p181 = pneg %p34
        $region34: #{tpu_custom_call.1} parent=31 // pred_check_branch
          %183 = sbr.rel (%p181) target = $region36
        $region35: #{tpu_custom_call.1} parent=31 // pred_region
          %s184 = smul.u32 4, %s14
          %p185 = scmp.lt.s32.totalorder %s184, 7
          %s186 = scalar_select %p185, %s184, 7
          %s187 = smul.addr %s186, 8
          %s188 = scalar_lea.vmem %s0, %s187
          %s189 = smul.u32 4, %s14
        $region36: #{tpu_custom_call.1} parent=31 // pred_fallthru
          _
      $region32: #{tpu_custom_call.1} parent=5 // pred_fallthru
        _
      %p190 = scmp.le.s32.totalorder 1, %s14
      %p191 = scmp.lt.s32.totalorder %s14, 3
      %p192 = pnand %p190, %p191
      %p193 = pneg %p192
      // Predicated region
      $region37: #{tpu_custom_call.1} parent=5 // pred_check
        _
      $region38: #{tpu_custom_call.1} parent=5 // pred_check_branch
        %195 = sbr.rel (%p192) target = $region40
      $region39: #{tpu_custom_call.1} parent=5 // pred_region
        %s196 = ssub.s32 %s14, 1
        %s197 = smul.u32 4, %s19
        %p198 = scmp.lt.s32.totalorder %s197, 7
        %s199 = scalar_select %p198, %s197, 7
        %s200 = smul.addr %s199, 8
        %s201 = scalar_lea.vmem %s0, %s200
        %p202 = pneg %p40
        %p203 = pneg %p37
        %p204 = pneg %p61
        %p205 = pneg %p58
        %p206 = pneg %p82
        %p207 = pneg %p79
        %p208 = pneg %p103
        %p209 = pneg %p100
        %p210 = pneg %p124
        %p211 = pneg %p121
        %p212 = pneg %p150
        %p213 = pneg %p147
        %s214 = sand.u32 %s137, 1
        %s215 = scalar_lea.sflag [#allocation3], %s214
        %s216 = sand.u32 %s137, 1
        %s217 = smul.addr %s216, 32
        %s218 = scalar_lea.vmem [#allocation2], %s217
        %s219 = smul.u32 4, %s19
        %p220 = scmp.lt.s32.totalorder %s219, 7
        %s221 = scalar_select %p220, %s219, 7
        %s222 = smul.addr %s221, 8
        %s223 = scalar_lea.vmem %s0, %s222
        %s224 = smul.u32 4, %s19
        %s225 = smul.u32 4, %s19
        %v226 = vld [vmem:[%s223] sm:$0xff]
        %v227 = vld [vmem:[%s223 + $0x8] sm:$0xff]
        %v228 = vld [vmem:[%s223 + $0x10] sm:$0xff]
        %v229 = vld [vmem:[%s223 + $0x18] sm:$0xff]
        %v230 = vld [vmem:[%s1] sm:$0xff]
        %v231 = vld [vmem:[%s1 + $0x8] sm:$0xff]
        %v232 = vld [vmem:[%s2] sm:$0x1]
        %v234 = vlaneseq
        %v235 = vshrl.u32 %v234, 7
        %v236 = vsub.s32 0, %v235
        %v237 = vrot.slane %v232, %v236
        %vm239 = vcmask 130048
        %v241 = vsel %vm239, %v226, 0
        %v244 = vsel %vm239, %v227, 0
        %v247 = vsel %vm239, %v228, 0
        %v250 = vsel %vm239, %v229, 0
        %252 = vmatprep.subr.mxu0 0.0
        %253 = vmatpush1.msra.mxu0 %v230
        %254 = vmatprep.subr.mxu0 0.0
        %255 = vmatpush1.msra.mxu0 %v231
        %256 = vmatprep.subr.mxu0 0.0
        %257 = vmatpush1.msra.mxu0 0.0
        %258 = vmatprep.subr.mxu0 0.0
        %259 = vmatpush1.msra.mxu0 0.0
        %260 = vmatprep.subr.mxu0 0.0
        %261 = vmatpush1.msra.mxu0 0.0
        %262 = vmatprep.subr.mxu0 0.0
        %263 = vmatpush1.msra.mxu0 0.0
        %264 = vmatprep.subr.mxu0 0.0
        %265 = vmatpush1.msra.mxu0 0.0
        %266 = vmatprep.subr.mxu0 0.0
        %267 = vmatpush1.msra.mxu0 0.0
        %268 = vmatprep.subr.mxu0 0.0
        %269 = vmatpush1.msra.mxu0 0.0
        %270 = vmatprep.subr.mxu0 0.0
        %271 = vmatpush1.msra.mxu0 0.0
        %272 = vmatprep.subr.mxu0 0.0
        %273 = vmatpush1.msra.mxu0 0.0
        %274 = vmatprep.subr.mxu0 0.0
        %275 = vmatpush1.msra.mxu0 0.0
        %276 = vmatprep.subr.mxu0 0.0
        %277 = vmatpush1.msra.mxu0 0.0
        %278 = vmatprep.subr.mxu0 0.0
        %279 = vmatpush1.msra.mxu0 0.0
        %280 = vmatprep.subr.mxu0 0.0
        %281 = vmatpush1.msra.mxu0 0.0
        %282 = vmatprep.subr.mxu0 0.0
        %283 = vmatpush1.msra.mxu0 0.0
        %284 = vmatprep.subr.mxu0 0.0
        %285 = vmatpush1.msra.mxu0 0.0
        %286 = vmatprep.subr.mxu0 0.0
        %287 = vmatpush1.msra.mxu0 0.0
        %288 = vmatprep.subr.mxu0 0.0
        %289 = vmatpush1.msra.mxu0 0.0
        %290 = vmatprep.subr.mxu0 0.0
        %291 = vmatpush1.msra.mxu0 0.0
        %292 = vmatprep.subr.mxu0 0.0
        %293 = vmatpush1.msra.mxu0 0.0
        %294 = vmatprep.subr.mxu0 0.0
        %295 = vmatpush1.msra.mxu0 0.0
        %296 = vmatprep.subr.mxu0 0.0
        %297 = vmatpush1.msra.mxu0 0.0
        %298 = vmatprep.subr.mxu0 0.0
        %299 = vmatpush1.msra.mxu0 0.0
        %300 = vmatprep.subr.mxu0 0.0
        %301 = vmatpush1.msra.mxu0 0.0
        %302 = vmatprep.subr.mxu0 0.0
        %303 = vmatpush1.msra.mxu0 0.0
        %304 = vmatprep.subr.mxu0 0.0
        %305 = vmatpush1.msra.mxu0 0.0
        %306 = vmatprep.subr.mxu0 0.0
        %307 = vmatpush1.msra.mxu0 0.0
        %308 = vmatprep.subr.mxu0 0.0
        %309 = vmatpush1.msra.mxu0 0.0
        %310 = vmatprep.subr.mxu0 0.0
        %311 = vmatpush1.msra.mxu0 0.0
        %312 = vmatprep.subr.mxu0 0.0
        %313 = vmatpush1.msra.mxu0 0.0
        %314 = vmatprep.subr.mxu0 0.0
        %315 = vmatpush1.msra.mxu0 0.0
        %316 = vmatprep.mubr.f32.mxu0 0.0
        %317 = vmatmul.mubr.f32.gmra.mrb[0].mxu0 %v241
        %v318 = vpop.f32.mrb[0].mxu0
        %v319 = vadd.f32 %v237, %v318
        %v320 = vpop.f32.mrb[0].mxu0
        %321 = vmatprep.mubr.f32.mxu0 0.0
        %322 = vmatmul.mubr.f32.gmra.mrb[0].mxu0 %v244
        %v323 = vpop.f32.mrb[0].mxu0
        %v324 = vadd.f32 %v237, %v323
        %v325 = vpop.f32.mrb[0].mxu0
        %326 = vmatprep.mubr.f32.mxu0 0.0
        %327 = vmatmul.mubr.f32.gmra.mrb[0].mxu0 %v247
        %v328 = vpop.f32.mrb[0].mxu0
        %v329 = vadd.f32 %v237, %v328
        %v330 = vpop.f32.mrb[0].mxu0
        %331 = vmatprep.mubr.f32.mxu0 0.0
        %332 = vmatmul.mubr.f32.gmra.mrb[0].mxu0 %v250
        %v333 = vpop.f32.mrb[0].mxu0
        %v334 = vadd.f32 %v237, %v333
        %v335 = vpop.f32.mrb[0].mxu0
        %336 = vdwg.mxu0
        %v337 = vmax.f32 %v319, 0.0
        %v338 = vmax.f32 %v324, 0.0
        %v339 = vmax.f32 %v329, 0.0
        %v340 = vmax.f32 %v334, 0.0
        %v341 = vld [vmem:[%s3] sm:$0xff]
        %v342 = vld [vmem:[%s3 + $0x8] sm:$0xff]
        %v343 = vld [vmem:[%s3 + $0x10] sm:$0xff]
        %v344 = vld [vmem:[%s3 + $0x18] sm:$0xff]
        %v345 = vld [vmem:[%s4] sm:$0x1]
        %v347 = vlaneseq
        %v348 = vshrl.u32 %v347, 7
        %v349 = vsub.s32 0, %v348
        %v350 = vrot.slane %v345, %v349
        %vm352 = vcmask 261120
        %v354 = vsel %vm352, %v337, 0
        %v357 = vsel %vm352, %v338, 0
        %v360 = vsel %vm352, %v339, 0
        %v363 = vsel %vm352, %v340, 0
        %365 = vmatprep.subr.mxu0 0.0
        %366 = vmatpush1.msra.mxu0 %v341
        %367 = vmatprep.subr.mxu0 0.0
        %368 = vmatpush1.msra.mxu0 %v342
        %369 = vmatprep.subr.mxu0 0.0
        %370 = vmatpush1.msra.mxu0 %v343
        %371 = vmatprep.subr.mxu0 0.0
        %372 = vmatpush1.msra.mxu0 %v344
        %373 = vmatprep.subr.mxu0 0.0
        %374 = vmatpush1.msra.mxu0 0.0
        %375 = vmatprep.subr.mxu0 0.0
        %376 = vmatpush1.msra.mxu0 0.0
        %377 = vmatprep.subr.mxu0 0.0
        %378 = vmatpush1.msra.mxu0 0.0
        %379 = vmatprep.subr.mxu0 0.0
        %380 = vmatpush1.msra.mxu0 0.0
        %381 = vmatprep.subr.mxu0 0.0
        %382 = vmatpush1.msra.mxu0 0.0
        %383 = vmatprep.subr.mxu0 0.0
        %384 = vmatpush1.msra.mxu0 0.0
        %385 = vmatprep.subr.mxu0 0.0
        %386 = vmatpush1.msra.mxu0 0.0
        %387 = vmatprep.subr.mxu0 0.0
        %388 = vmatpush1.msra.mxu0 0.0
        %389 = vmatprep.subr.mxu0 0.0
        %390 = vmatpush1.msra.mxu0 0.0
        %391 = vmatprep.subr.mxu0 0.0
        %392 = vmatpush1.msra.mxu0 0.0
        %393 = vmatprep.subr.mxu0 0.0
        %394 = vmatpush1.msra.mxu0 0.0
        %395 = vmatprep.subr.mxu0 0.0
        %396 = vmatpush1.msra.mxu0 0.0
        %397 = vmatprep.subr.mxu0 0.0
        %398 = vmatpush1.msra.mxu0 0.0
        %399 = vmatprep.subr.mxu0 0.0
        %400 = vmatpush1.msra.mxu0 0.0
        %401 = vmatprep.subr.mxu0 0.0
        %402 = vmatpush1.msra.mxu0 0.0
        %403 = vmatprep.subr.mxu0 0.0
        %404 = vmatpush1.msra.mxu0 0.0
        %405 = vmatprep.subr.mxu0 0.0
        %406 = vmatpush1.msra.mxu0 0.0
        %407 = vmatprep.subr.mxu0 0.0
        %408 = vmatpush1.msra.mxu0 0.0
        %409 = vmatprep.subr.mxu0 0.0
        %410 = vmatpush1.msra.mxu0 0.0
        %411 = vmatprep.subr.mxu0 0.0
        %412 = vmatpush1.msra.mxu0 0.0
        %413 = vmatprep.subr.mxu0 0.0
        %414 = vmatpush1.msra.mxu0 0.0
        %415 = vmatprep.subr.mxu0 0.0
        %416 = vmatpush1.msra.mxu0 0.0
        %417 = vmatprep.subr.mxu0 0.0
        %418 = vmatpush1.msra.mxu0 0.0
        %419 = vmatprep.subr.mxu0 0.0
        %420 = vmatpush1.msra.mxu0 0.0
        %421 = vmatprep.subr.mxu0 0.0
        %422 = vmatpush1.msra.mxu0 0.0
        %423 = vmatprep.subr.mxu0 0.0
        %424 = vmatpush1.msra.mxu0 0.0
        %425 = vmatprep.subr.mxu0 0.0
        %426 = vmatpush1.msra.mxu0 0.0
        %427 = vmatprep.subr.mxu0 0.0
        %428 = vmatpush1.msra.mxu0 0.0
        %429 = vmatprep.mubr.f32.mxu0 0.0
        %430 = vmatmul.mubr.f32.gmra.mrb[0].mxu0 %v354
        %v431 = vpop.f32.mrb[0].mxu0
        %v432 = vadd.f32 %v350, %v431
        %v433 = vpop.f32.mrb[0].mxu0
        %434 = vmatprep.mubr.f32.mxu0 0.0
        %435 = vmatmul.mubr.f32.gmra.mrb[0].mxu0 %v357
        %v436 = vpop.f32.mrb[0].mxu0
        %v437 = vadd.f32 %v350, %v436
        %v438 = vpop.f32.mrb[0].mxu0
        %439 = vmatprep.mubr.f32.mxu0 0.0
        %440 = vmatmul.mubr.f32.gmra.mrb[0].mxu0 %v360
        %v441 = vpop.f32.mrb[0].mxu0
        %v442 = vadd.f32 %v350, %v441
        %v443 = vpop.f32.mrb[0].mxu0
        %444 = vmatprep.mubr.f32.mxu0 0.0
        %445 = vmatmul.mubr.f32.gmra.mrb[0].mxu0 %v363
        %v446 = vpop.f32.mrb[0].mxu0
        %v447 = vadd.f32 %v350, %v446
        %v448 = vpop.f32.mrb[0].mxu0
        %449 = vdwg.mxu0
        %450 = vmax.xlane.f32.xlu0 %v432
        %v451 = vpop.xlane.xlu0 %450
        %452 = vmax.xlane.f32.xlu0 %v437
        %v453 = vpop.xlane.xlu0 %452
        %454 = vmax.xlane.f32.xlu0 %v442
        %v455 = vpop.xlane.xlu0 %454
        %456 = vmax.xlane.f32.xlu0 %v447
        %v457 = vpop.xlane.xlu0 %456
        %v458 = vsub.f32 %v432, %v451
        %v459 = vsub.f32 %v437, %v453
        %v460 = vsub.f32 %v442, %v455
        %v461 = vsub.f32 %v447, %v457
        %v462 = vmul.f32 %v458, 1.442695
        %v463 = vpow.pop %v462
        %v464 = vmul.f32 %v459, 1.442695
        %v465 = vpow.pop %v464
        %v466 = vmul.f32 %v460, 1.442695
        %v467 = vpow.pop %v466
        %v468 = vmul.f32 %v461, 1.442695
        %v469 = vpow.pop %v468
        %470 = vadd.xlane.f32.xlu0 %v463
        %v471 = vpop.xlane.xlu0 %470
        %472 = vadd.xlane.f32.xlu0 %v465
        %v473 = vpop.xlane.xlu0 %472
        %474 = vadd.xlane.f32.xlu0 %v467
        %v475 = vpop.xlane.xlu0 %474
        %476 = vadd.xlane.f32.xlu0 %v469
        %v477 = vpop.xlane.xlu0 %476
        %v478 = vlog2.pop %v471
        %v479 = vmul.f32 %v478, 0.6931472
        %v480 = vlog2.pop %v473
        %v481 = vmul.f32 %v480, 0.6931472
        %v482 = vlog2.pop %v475
        %v483 = vmul.f32 %v482, 0.6931472
        %v484 = vlog2.pop %v477
        %v485 = vmul.f32 %v484, 0.6931472
        %v486 = vsub.f32 %v458, %v479
        %v487 = vsub.f32 %v459, %v481
        %v488 = vsub.f32 %v460, %v483
        %v489 = vsub.f32 %v461, %v485
        %490 = vst [vmem:[%s218] sm:$0xff] %v486
        %491 = vst [vmem:[%s218 + $0x8] sm:$0xff] %v487
        %492 = vst [vmem:[%s218 + $0x10] sm:$0xff] %v488
        %493 = vst [vmem:[%s218 + $0x18] sm:$0xff] %v489
        %s494 = sand.u32 %s137, 1
        %s495 = scalar_lea.sflag [#allocation3], %s494
        %s496 = sand.u32 %s137, 1
        %s497 = smul.addr %s496, 32
        %s498 = scalar_lea.vmem [#allocation2], %s497
        // Predicated region
        $region41: #{tpu_custom_call.1} parent=39 // pred_check
          %p499 = pneg %p147
        $region42: #{tpu_custom_call.1} parent=39 // pred_check_branch
          %501 = sbr.rel (%p499) target = $region44
        $region43: #{tpu_custom_call.1} parent=39 // pred_region
          %s502 = smul.u32 4, %s19
          %s504 = ssub.s32 512, 512
          %505 = vsyncadd %s495, %s504
          %s506 = smul.addr %s502, 128
          %s507 = scalar_lea.hbm %s5, %s506
          %s508 = sshll.u32 %s498, 4
          %s509 = int_to_ptr.vmem [resolvable:$true] %s508
          %514 = dma.vmem_to_hbm [thread:$0]  %s509, 512, %s507, %s495, 128, 128, 8
        $region44: #{tpu_custom_call.1} parent=39 // pred_fallthru
          _
      $region40: #{tpu_custom_call.1} parent=5 // pred_fallthru
        _
      %p515 = scmp.le.s32.totalorder 2, %s14
      // Predicated region
      $region45: #{tpu_custom_call.1} parent=5 // pred_check
        %p516 = pneg %p515
      $region46: #{tpu_custom_call.1} parent=5 // pred_check_branch
        %518 = sbr.rel (%p516) target = $region48
      $region47: #{tpu_custom_call.1} parent=5 // pred_region
        %s519 = ssub.s32 %s14, 2
        // Predicated region
        $region49: #{tpu_custom_call.1} parent=47 // pred_check
          %p520 = pneg %p153
        $region50: #{tpu_custom_call.1} parent=47 // pred_check_branch
          %522 = sbr.rel (%p520) target = $region52
        $region51: #{tpu_custom_call.1} parent=47 // pred_region
          %s523 = sand.u32 %s138, 1
          %s524 = scalar_lea.sflag [#allocation3], %s523
          %s525 = sand.u32 %s138, 1
          %s526 = smul.addr %s525, 32
          %s527 = scalar_lea.vmem [#allocation2], %s526
          %528 = dma.done %s524, 512
        $region52: #{tpu_custom_call.1} parent=47 // pred_fallthru
          _
      $region48: #{tpu_custom_call.1} parent=5 // pred_fallthru
        _
    $region6: #{tpu_custom_call.1} parent=1 // loop_footer
      %s18 = sadd.s32 1, %s14
    $region7: #{tpu_custom_call.1} parent=1 // loop_footer_branch
      %13 = sbr.rel target = $region3
    $region8: #{tpu_custom_call.1} parent=1 // loop_exit
      _
    %529 = vsyncpa [#allocation3], 1
    %s530 = scalar_lea.sflag [#allocation3], 1
    %531 = vsyncpa %s530, 1

</llo_original>
